<compile_context>
chip_gen: v6e
topology: v6e:2x2x1
jax: 0.10.0
libtpu: 0.0.40
codegen_flags: <defaults>
</compile_context>

<pallas_src>
import functools

import jax
import jax.numpy as jnp
from jax.experimental import pallas as pl
from jax.experimental.pallas import tpu as pltpu

NEGATIVE_SLOPE = 0.01

_SMALL_SLAB_BYTES = 1 << 20   # <= 1 MiB: single block; per-step overhead dominates
_MIN_GRID_STEPS = 4           # >=4 and even: pipeline overlap + v7x 2-TC balance


@functools.lru_cache(maxsize=None)
def _hw_budget():
    """Return (max_block_bytes, vmem_limit_bytes) for the local TPU generation."""
    try:
        vmem_cap = int(getattr(pltpu.get_tpu_info(), "vmem_capacity_bytes", 128 << 20))
    except Exception:  # no TPU / query unavailable -> conservative default
        vmem_cap = 128 << 20
    if vmem_cap <= (64 << 20):
        # v7x: 64 MiB physical VMEM per TC -> 6 MiB blocks, 36 MiB scoped limit
        # (2 in-bufs + 2 out-bufs = 24 MiB + headroom).
        return 6 << 20, 36 << 20
    # v5e / v6e: 128 MiB physical -> 8 MiB blocks; raise scoped limit to 48 MiB
    # (v5e default is only 16 MiB, which 2x(in+out) 8 MiB buffers would blow).
    return 8 << 20, 48 << 20


def _pick_width(total: int) -> int:
    """Widest lane-dense last dim (multiple of 128) that divides `total`."""
    for cand in (4096, 2048, 1024, 512, 256, 128):
        if total % cand == 0:
            return cand
    return 0


def _pick_block_rows(rows: int, width: int, itemsize: int,
                     max_block_bytes: int, pack: int) -> int:
    """Rows per block: pipelined, VMEM-safe, sublane-packed, tail-friendly."""
    slab_bytes = rows * width * itemsize
    if slab_bytes <= _SMALL_SLAB_BYTES or rows <= pack:
        return rows  # single full-slab block
    # Enough grid steps to (a) respect the block budget, (b) give the pipeline
    # >=4 steps, (c) stay even so v7x's two TensorCores split evenly.
    steps = max(_MIN_GRID_STEPS, pl.cdiv(slab_bytes, max_block_bytes))
    if steps % 2:
        steps += 1
    block_rows = pl.cdiv(rows, steps)
    # Round up to the dtype's packed sublane tile (8 f32 / 16 bf16 / 32 int8).
    block_rows = ((block_rows + pack - 1) // pack) * pack
    block_rows = max(pack, min(block_rows, rows))
    # Prefer a block_rows that divides rows exactly (no masked tail block);
    # only accept candidates >= half the target so blocks stay large.
    if rows % block_rows:
        lo = max(pack, (block_rows // 2 // pack) * pack)
        for cand in range(block_rows, lo - 1, -pack):
            if rows % cand == 0:
                block_rows = cand
                break
    return block_rows


@functools.partial(jax.jit, static_argnames=("negative_slope", "inplace"))
def leaky_relu(a: jax.Array,
               negative_slope: float = NEGATIVE_SLOPE,
               inplace: bool = False) -> jax.Array:
    if not jnp.issubdtype(a.dtype, jnp.floating):
        # Matches torch.nn.functional.leaky_relu, which rejects integer tensors.
        raise TypeError(f"leaky_relu requires a floating dtype, got {a.dtype}")

    orig_shape = a.shape
    total = a.size
    if total == 0:
        return a

    width = _pick_width(total)
    if width == 0:
        # TODO(synk): ragged flat sizes (not a multiple of 128) fall back to XLA;
        # `inplace` aliasing is not honored on this path.
        return jnp.where(a >= 0, a, a * jnp.asarray(negative_slope, a.dtype))

    rows = total // width
    x2d = jnp.reshape(a, (rows, width))  # contiguous reshape: free under jit

    itemsize = jnp.dtype(a.dtype).itemsize
    pack = max(8, 32 // itemsize)        # packed sublane tile for this dtype
    max_block_bytes, vmem_limit = _hw_budget()
    block_rows = _pick_block_rows(rows, width, itemsize, max_block_bytes, pack)
    grid = (pl.cdiv(rows, block_rows),)

    use_max = 0.0 <= negative_slope <= 1.0  # max(x, s*x) == leaky_relu iff s in [0,1]

    def kernel(x_ref, o_ref):
        x = x_ref[...]
        scaled = x * jnp.asarray(negative_slope, x.dtype)
        if use_max:
            o_ref[...] = jnp.maximum(x, scaled)          # mul + max (2 VPU ops)
        else:
            o_ref[...] = jnp.where(x >= 0, x, scaled)    # cmp + select + mul

    out2d = pl.pallas_call(
        kernel,
        out_shape=jax.ShapeDtypeStruct((rows, width), a.dtype),
        grid=grid,
        in_specs=[pl.BlockSpec((block_rows, width), lambda i: (i, 0))],
        out_specs=pl.BlockSpec((block_rows, width), lambda i: (i, 0)),
        compiler_params=pltpu.CompilerParams(
            dimension_semantics=("parallel",),
            vmem_limit_bytes=vmem_limit),
        input_output_aliases={0: 0} if inplace else {},
    )(x2d)

    return jnp.reshape(out2d, orig_shape)


if __name__ == "__main__":
    key = jax.random.PRNGKey(0)

    # Primary test: NCHW input, same convention as the PyTorch module's tests.
    x = jax.random.normal(key, (2, 4, 16, 16), dtype=jnp.float32)
    out = jax.block_until_ready(leaky_relu(x))
    ref = jnp.where(x >= 0, x, x * NEGATIVE_SLOPE)
    assert out.shape == x.shape and out.dtype == x.dtype
    assert jnp.allclose(out, ref, atol=1e-6, rtol=1e-6)

    # Secondary test: a slab > 1 MiB to exercise the multi-block pipelined path.
    k2 = jax.random.PRNGKey(1)
    y = jax.random.normal(k2, (8, 4, 128, 128), dtype=jnp.float32)  # 2 MiB
    out_y = jax.block_until_ready(leaky_relu(y, negative_slope=0.2))
    ref_y = jnp.where(y >= 0, y, y * 0.2)
    assert jnp.allclose(out_y, ref_y, atol=1e-6, rtol=1e-6)

    # bf16 path (16-row packed sublane tile) + inplace aliasing flag.
    z = jax.random.normal(k2, (4, 8, 64, 64), dtype=jnp.bfloat16)
    out_z = jax.block_until_ready(leaky_relu(z, inplace=True))
    ref_z = jnp.where(z >= 0, z, z * jnp.bfloat16(NEGATIVE_SLOPE))
    assert jnp.allclose(out_z.astype(jnp.float32), ref_z.astype(jnp.float32),
                        atol=1e-2, rtol=1e-2)

    print("KERNEL_OK")
</pallas_src>

<mosaic_0001>
module attributes {stable_mosaic.version = 11 : i64} {
  func.func @kernel(%arg0: i32, %arg1: memref<1x2048xf32, #tpu.memory_space<vmem>>, %arg2: memref<1x2048xf32, #tpu.memory_space<vmem>>) attributes {dimension_semantics = [#tpu.dimension_semantics<parallel>], iteration_bounds = array<i64: 1>, scalar_prefetch = 0 : i64, scratch_operands = 0 : i64, tpu.core_type = #tpu.core_type<tc>, window_params = [{transform_indices = @transform_0, window_bounds = array<i64: 1, 2048>}, {transform_indices = @transform_1, window_bounds = array<i64: 1, 2048>}]} {
    %c0 = arith.constant 0 : index
    %c0_0 = arith.constant 0 : index
    %0 = vector.load %arg1[%c0, %c0_0] : memref<1x2048xf32, #tpu.memory_space<vmem>>, vector<1x2048xf32>
    %cst = arith.constant 0.00999999977 : f32
    %1 = vector.broadcast %cst : f32 to vector<1x2048xf32>
    %2 = arith.mulf %0, %1 : vector<1x2048xf32>
    %3 = arith.maximumf %0, %2 : vector<1x2048xf32>
    %c0_1 = arith.constant 0 : index
    %c0_2 = arith.constant 0 : index
    %4 = vector.load %arg2[%c0_1, %c0_2] : memref<1x2048xf32, #tpu.memory_space<vmem>>, vector<1x2048xf32>
    tpu.vector_store %arg2[%c0_1, %c0_2], %3 {strides = array<i32>} : memref<1x2048xf32, #tpu.memory_space<vmem>>, vector<1x2048xf32>,
    return
  }
  func.func @transform_0(%arg0: i32) -> (i32, i32) {
    %c0_i32 = arith.constant 0 : i32
    %c0_i32_0 = arith.constant 0 : i32
    return %arg0, %c0_i32 : i32, i32
  }
  func.func @transform_1(%arg0: i32) -> (i32, i32) {
    %c0_i32 = arith.constant 0 : i32
    %c0_i32_0 = arith.constant 0 : i32
    return %arg0, %c0_i32 : i32, i32
  }
}

</mosaic_0001>

<llo_original>
// kernel: leaky_relu.1
$region0: #{leaky_relu.1}
  #allocation0 [shape = 'u32[]', space=smem, size = 0x4, offset = 0x4, fixed_abs, tag = 'smem constant byte address 0x4 - core index']
  #allocation1 [shape = 'u32[144,128]{1,0:T(1,128)}', space=vmem, size = 0x12000, scoped, tag = 'internal scratch']
  %s0 = inlined_call_operand.vmem [shape: f32[1,2048], index: 0, kind: input, shape index: {}]
  %s1 = inlined_call_operand.vmem [shape: f32[1,2048], index: 1, kind: output, shape index: {}]
  %s2 = sld [smem:[#allocation0]]
  $region14: #{leaky_relu.1} parent=0
    _
  %s4 = ssub.s32 1, %s2
  %s5 = scalar_select 0, %s4, %s2
  // Predicated region
  $region2: #{leaky_relu.1} parent=0 // pred_check
    _
  $region3: #{leaky_relu.1} parent=0 // pred_check_branch
    %7 = sbr.rel (0) target = $region5
  $region4: #{leaky_relu.1} parent=0 // pred_region
    _
  $region5: #{leaky_relu.1} parent=0 // pred_fallthru
    _
  %v8 = vld [vmem:[%s0] sm:$0xff]
  %v9 = vld [vmem:[%s0 + $0x8] sm:$0xff]
  %v10 = vmul.f32 %v8, 0.01
  %v11 = vmul.f32 %v9, 0.01
  %v12 = vmax.f32 %v8, %v10
  %v13 = vmax.f32 %v9, %v11
  %14 = vst [vmem:[%s1] sm:$0xff] %v12
  %15 = vst [vmem:[%s1 + $0x8] sm:$0xff] %v13
  // Predicated region
  $region6: #{leaky_relu.1} parent=0 // pred_check
    _
  $region7: #{leaky_relu.1} parent=0 // pred_check_branch
    %17 = sbr.rel (0) target = $region9
  $region8: #{leaky_relu.1} parent=0 // pred_region
    _
  $region9: #{leaky_relu.1} parent=0 // pred_fallthru
    _
  // Predicated region
  $region10: #{leaky_relu.1} parent=0 // pred_check
    _
  $region11: #{leaky_relu.1} parent=0 // pred_check_branch
    %19 = sbr.rel (0) target = $region13
  $region12: #{leaky_relu.1} parent=0 // pred_region
    _
  $region13: #{leaky_relu.1} parent=0 // pred_fallthru
    _

</llo_original>
